<compile_context>
chip_gen: v6e
topology: v6e:2x2x1
jax: 0.10.0
libtpu: 0.0.40
codegen_flags: <defaults>
</compile_context>

<pallas_src>
import functools

import jax
import jax.numpy as jnp
from jax import lax
from jax.experimental import pallas as pl
from jax.experimental.pallas import tpu as pltpu

LRELU_SLOPE = 0.2
IN_EPS = 1e-5
LANE = 128
SUBLANE = 8
TM_MAX = 1024                      # upper bound on M-tile rows for conv matmuls
VMEM_BUDGET = 40 * 1024 * 1024     # per-block VMEM budget (headroom for v7x 64 MiB)


def _round_up(x, m):
    return ((x + m - 1) // m) * m


def _pick_tm(m, k, cout_p):
    """Largest M-tile (multiple of 8, <= TM_MAX) fitting the VMEM budget.

    Footprint counted: double-buffered patch tiles (bf16), double-buffered
    output tiles (f32), plus weights/bias blocks (counted x2 to be safe even
    though their index map is constant).
    """
    w_bytes = 2 * (k * cout_p * 2 + cout_p * 4)
    tm = TM_MAX
    while tm > SUBLANE:
        need = w_bytes + 2 * tm * k * 2 + 2 * tm * cout_p * 4
        if need <= VMEM_BUDGET:
            break
        tm //= 2
    if m <= tm:
        tm = _round_up(m, SUBLANE)
    return tm


# -----------------------------------------------------------------------------
# Pallas kernels
# -----------------------------------------------------------------------------
def _conv_matmul_kernel(p_ref, w_ref, b_ref, o_ref, *, apply_lrelu: bool):
    """One M-tile of the im2col conv: (TM,K)bf16 @ (K,Cout)bf16 -> f32 epilogue."""
    acc = jnp.dot(p_ref[...], w_ref[...], preferred_element_type=jnp.float32)
    acc = acc + b_ref[...]                       # (1, Cout) broadcasts over TM
    if apply_lrelu:
        acc = jnp.where(acc >= 0, acc, LRELU_SLOPE * acc)
    o_ref[...] = acc.astype(o_ref.dtype)


def _instnorm_lrelu_kernel(x_ref, o_ref):
    """InstanceNorm2d(affine=False, eps=1e-5) + LeakyReLU(0.2).

    Block shape is (1, H*W, Cblk): per-sample, per-channel stats over the
    spatial axis (biased variance, PyTorch default).  Variance is computed in a
    single traversal as E[x^2] - mean^2; rsqrt goes to the EUP slot.
    """
    x = x_ref[...]                               # (1, HW, Cblk) f32
    mean = jnp.mean(x, axis=1, keepdims=True)
    meansq = jnp.mean(x * x, axis=1, keepdims=True)
    var = jnp.maximum(meansq - mean * mean, 0.0)
    y = (x - mean) * lax.rsqrt(var + IN_EPS)
    o_ref[...] = jnp.where(y >= 0, y, LRELU_SLOPE * y).astype(o_ref.dtype)


# -----------------------------------------------------------------------------
# Wrappers
# -----------------------------------------------------------------------------
def _im2col(x_nhwc, kh, kw, stride, pad):
    """Plain-JAX glue: extract conv patches.  Returns (N*Ho*Wo, kh*kw*C), Ho, Wo."""
    n, h, w, c = x_nhwc.shape
    ho = (h + 2 * pad - kh) // stride + 1
    wo = (w + 2 * pad - kw) // stride + 1
    if ho <= 0 or wo <= 0:
        raise ValueError(
            f"Spatial size {h}x{w} too small for kernel={kh}, stride={stride}, "
            f"pad={pad}: output would be {ho}x{wo}.")
    xp = jnp.pad(x_nhwc, ((0, 0), (pad, pad), (pad, pad), (0, 0)))
    cols = []
    for i in range(kh):
        for j in range(kw):
            cols.append(xp[:, i:i + stride * ho:stride, j:j + stride * wo:stride, :])
    patches = jnp.stack(cols, axis=3)            # (N, Ho, Wo, kh*kw, C)
    return patches.reshape(n * ho * wo, kh * kw * c), ho, wo


def conv2d_pallas(x_nhwc, w_oihw, bias, *, stride, pad, lrelu):
    """Conv2d(kernel=4) via bf16 im2col + M-tiled Pallas MXU matmul kernel."""
    n = x_nhwc.shape[0]
    cout, cin, kh, kw = w_oihw.shape

    # bf16 MXU inputs (f32 accumulation in the kernel); halves HBM traffic of
    # the kh*kw-expanded patch matrix.
    patches, ho, wo = _im2col(x_nhwc.astype(jnp.bfloat16), kh, kw, stride, pad)
    m, k = patches.shape

    # Lane-dense output: pad Cout up to a multiple of 128 (zero weight columns /
    # zero bias), slice back afterwards.  Critical for the final Cout=1 conv.
    cout_p = _round_up(cout, LANE)
    # (Cout, Cin, kh, kw) -> (kh, kw, Cin, Cout) -> (kh*kw*Cin, Cout); matches
    # the patch flattening order (kernel-position major, channel minor).
    w_mat = jnp.transpose(w_oihw, (2, 3, 1, 0)).reshape(k, cout).astype(jnp.bfloat16)
    b_mat = bias.reshape(1, cout).astype(jnp.float32)
    if cout_p != cout:
        w_mat = jnp.pad(w_mat, ((0, 0), (0, cout_p - cout)))
        b_mat = jnp.pad(b_mat, ((0, 0), (0, cout_p - cout)))

    # Adaptive M-tile: as large as the VMEM budget allows (double-buffered),
    # full rows rounded to the sublane when the whole problem fits one tile.
    tm = _pick_tm(m, k, cout_p)
    m_p = _round_up(m, tm)
    if m_p != m:
        patches = jnp.pad(patches, ((0, m_p - m), (0, 0)))   # zero rows, sliced off later

    grid = (m_p // tm,)
    cost = pl.CostEstimate(
        flops=2 * m_p * k * cout_p,
        transcendentals=0,
        bytes_accessed=m_p * k * 2 + k * cout_p * 2 + m_p * cout_p * 4)

    out = pl.pallas_call(
        functools.partial(_conv_matmul_kernel, apply_lrelu=lrelu),
        out_shape=jax.ShapeDtypeStruct((m_p, cout_p), jnp.float32),
        grid=grid,
        in_specs=[
            pl.BlockSpec((tm, k), lambda i: (i, 0)),        # patches: tiled over M
            pl.BlockSpec((k, cout_p), lambda i: (0, 0)),    # weights: VMEM-resident
            pl.BlockSpec((1, cout_p), lambda i: (0, 0)),    # bias: VMEM-resident
        ],
        out_specs=pl.BlockSpec((tm, cout_p), lambda i: (i, 0)),
        compiler_params=pltpu.CompilerParams(
            dimension_semantics=("parallel",),
            vmem_limit_bytes=64 * 1024 * 1024),
        cost_estimate=cost,
    )(patches, w_mat, b_mat)

    return out[:m, :cout].reshape(n, ho, wo, cout)


def instance_norm_lrelu_pallas(x_nhwc):
    """Fused InstanceNorm2d + LeakyReLU(0.2), gridded over (batch, channel blocks)."""
    n, h, w, c = x_nhwc.shape
    hw = h * w
    x = x_nhwc.reshape(n, hw, c)
    cblk = LANE if (c >= LANE and c % LANE == 0) else c
    grid = (n, c // cblk)
    out = pl.pallas_call(
        _instnorm_lrelu_kernel,
        out_shape=jax.ShapeDtypeStruct((n, hw, c), jnp.float32),
        grid=grid,
        in_specs=[pl.BlockSpec((1, hw, cblk), lambda b, j: (b, 0, j))],
        out_specs=pl.BlockSpec((1, hw, cblk), lambda b, j: (b, 0, j)),
        compiler_params=pltpu.CompilerParams(
            dimension_semantics=("parallel", "parallel"),
            vmem_limit_bytes=64 * 1024 * 1024),
    )(x)
    return out.reshape(n, h, w, c)


# -----------------------------------------------------------------------------
# NLayerDiscriminator parameters + forward
# -----------------------------------------------------------------------------
def init_params(key, input_nc, ndf=64, n_layers=3):
    """Deterministic synthetic init (N(0, 0.02) weights, zero bias)."""
    kw = 4
    channels = [(input_nc, ndf)]
    nf_mult = 1
    for n in range(1, n_layers):
        nf_prev, nf_mult = nf_mult, min(2 ** n, 8)
        channels.append((ndf * nf_prev, ndf * nf_mult))
    nf_prev, nf_mult = nf_mult, min(2 ** n_layers, 8)
    channels.append((ndf * nf_prev, ndf * nf_mult))
    channels.append((ndf * nf_mult, 1))

    params = []
    for cin, cout in channels:
        key, k = jax.random.split(key)
        w = 0.02 * jax.random.normal(k, (cout, cin, kw, kw), dtype=jnp.float32)
        b = jnp.zeros((cout,), dtype=jnp.float32)
        params.append((w, b))
    return params


def nlayer_discriminator_forward(x_nchw, params, n_layers=3):
    """Forward pass.  Input/output are NCHW float32 (PyTorch convention)."""
    x = jnp.transpose(x_nchw, (0, 2, 3, 1)).astype(jnp.float32)   # -> NHWC

    # Layer 1: Conv(stride=2) + LeakyReLU (no norm) — LReLU fused into conv kernel.
    w, b = params[0]
    x = conv2d_pallas(x, w, b, stride=2, pad=1, lrelu=True)

    # Layers 2..n_layers: Conv(stride=2) + InstanceNorm + LeakyReLU.
    for li in range(1, n_layers):
        w, b = params[li]
        x = conv2d_pallas(x, w, b, stride=2, pad=1, lrelu=False)
        x = instance_norm_lrelu_pallas(x)

    # Penultimate: Conv(stride=1) + InstanceNorm + LeakyReLU.
    w, b = params[n_layers]
    x = conv2d_pallas(x, w, b, stride=1, pad=1, lrelu=False)
    x = instance_norm_lrelu_pallas(x)

    # Final: Conv(stride=1) -> 1 channel (lane-dense via Cout padding inside).
    w, b = params[n_layers + 1]
    x = conv2d_pallas(x, w, b, stride=1, pad=1, lrelu=False)

    return jnp.transpose(x, (0, 3, 1, 2))                          # -> NCHW


# -----------------------------------------------------------------------------
# Pure-JAX reference (correctness sanity check)
# -----------------------------------------------------------------------------
def _ref_forward(x_nchw, params, n_layers=3, matmul_dtype=jnp.float32):
    def conv(x, w, b, stride):
        w_hwio = jnp.transpose(w, (2, 3, 1, 0)).astype(matmul_dtype)
        y = lax.conv_general_dilated(
            x.astype(matmul_dtype), w_hwio, window_strides=(stride, stride),
            padding=[(1, 1), (1, 1)],
            dimension_numbers=("NHWC", "HWIO", "NHWC"),
            preferred_element_type=jnp.float32)
        return y + b[None, None, None, :]

    def inorm_lrelu(x):
        mean = jnp.mean(x, axis=(1, 2), keepdims=True)
        var = jnp.mean((x - mean) ** 2, axis=(1, 2), keepdims=True)
        y = (x - mean) * lax.rsqrt(var + IN_EPS)
        return jnp.where(y >= 0, y, LRELU_SLOPE * y)

    x = jnp.transpose(x_nchw, (0, 2, 3, 1)).astype(jnp.float32)
    w, b = params[0]
    x = conv(x, w, b, 2)
    x = jnp.where(x >= 0, x, LRELU_SLOPE * x)
    for li in range(1, n_layers):
        w, b = params[li]
        x = inorm_lrelu(conv(x, w, b, 2))
    w, b = params[n_layers]
    x = inorm_lrelu(conv(x, w, b, 1))
    w, b = params[n_layers + 1]
    x = conv(x, w, b, 1)
    return jnp.transpose(x, (0, 3, 1, 2))


# -----------------------------------------------------------------------------
if __name__ == "__main__":
    # Smallest shapes consistent with the module: five stacked 4x4 convs (pad=1,
    # three stride-2 + two stride-1) need a >=32x32 input to keep every layer's
    # spatial extent positive (16x16 would give a 0x0 final output, as in PyTorch).
    # batch=2, input_nc=4, 32x32 input, ndf=16, n_layers=3
    # (channels: 4 -> 16 -> 32 -> 64 -> 128 -> 1; spatial: 32->16->8->4->3->2).
    B, INPUT_NC, H, W = 2, 4, 32, 32
    NDF, N_LAYERS = 16, 3

    key = jax.random.PRNGKey(0)
    key, kx = jax.random.split(key)
    x = jax.random.normal(kx, (B, INPUT_NC, H, W), dtype=jnp.float32)
    params = init_params(key, INPUT_NC, ndf=NDF, n_layers=N_LAYERS)

    out = jax.block_until_ready(
        nlayer_discriminator_forward(x, params, n_layers=N_LAYERS))

    # (1) Tight check against a reference that uses the same bf16-input /
    #     f32-accumulate matmul precision as the kernels.
    ref_bf16 = jax.block_until_ready(
        _ref_forward(x, params, n_layers=N_LAYERS, matmul_dtype=jnp.bfloat16))
    assert out.shape == ref_bf16.shape, (out.shape, ref_bf16.shape)
    assert jnp.allclose(out, ref_bf16, atol=2e-3, rtol=2e-3), float(
        jnp.max(jnp.abs(out - ref_bf16)))

    # (2) Loose check against a full-f32 reference bounding the bf16 precision loss.
    ref_f32 = jax.block_until_ready(
        _ref_forward(x, params, n_layers=N_LAYERS, matmul_dtype=jnp.float32))
    assert jnp.allclose(out, ref_f32, atol=1e-1, rtol=1e-1), float(
        jnp.max(jnp.abs(out - ref_f32)))

    print("KERNEL_OK")
</pallas_src>

<mosaic_0001>
module attributes {stable_mosaic.version = 11 : i64} {
  func.func @_conv_matmul_kernel(%arg0: i32, %arg1: memref<512x64xbf16, #tpu.memory_space<vmem>>, %arg2: memref<64x128xbf16, #tpu.memory_space<vmem>>, %arg3: memref<1x128xf32, #tpu.memory_space<vmem>>, %arg4: memref<512x128xf32, #tpu.memory_space<vmem>>) attributes {dimension_semantics = [#tpu.dimension_semantics<parallel>], iteration_bounds = array<i64: 1>, scalar_prefetch = 0 : i64, scratch_operands = 0 : i64, tpu.core_type = #tpu.core_type<tc>, window_params = [{transform_indices = @transform_0, window_bounds = array<i64: 512, 64>}, {pipeline_mode = #tpu.pipeline_mode<synchronous>, transform_indices = @transform_1, window_bounds = array<i64: 64, 128>}, {pipeline_mode = #tpu.pipeline_mode<synchronous>, transform_indices = @transform_2, window_bounds = array<i64: 1, 128>}, {transform_indices = @transform_3, window_bounds = array<i64: 512, 128>}]} {
    %c0 = arith.constant 0 : index
    %c0_0 = arith.constant 0 : index
    %0 = vector.load %arg1[%c0, %c0_0] : memref<512x64xbf16, #tpu.memory_space<vmem>>, vector<512x64xbf16>
    %c0_1 = arith.constant 0 : index
    %c0_2 = arith.constant 0 : index
    %1 = vector.load %arg2[%c0_1, %c0_2] : memref<64x128xbf16, #tpu.memory_space<vmem>>, vector<64x128xbf16>
    %cst = arith.constant dense<0.000000e+00> : vector<512x128xf32>
    %2 = tpu.matmul %0, %1, %cst {dimension_numbers = #tpu.dot_dimension_numbers<[1], [0], [0], [1], [0, 0, 1, 1], [], []>} : vector<512x64xbf16>, vector<64x128xbf16>, vector<512x128xf32> -> vector<512x128xf32>
    %c0_3 = arith.constant 0 : index
    %c0_4 = arith.constant 0 : index
    %3 = vector.load %arg3[%c0_3, %c0_4] : memref<1x128xf32, #tpu.memory_space<vmem>>, vector<1x128xf32>
    %4 = vector.broadcast %3 : vector<1x128xf32> to vector<512x128xf32>
    %5 = arith.addf %2, %4 : vector<512x128xf32>
    %cst_5 = arith.constant 0.000000e+00 : f32
    %6 = vector.broadcast %cst_5 : f32 to vector<512x128xf32>
    %7 = arith.cmpf oge, %5, %6 : vector<512x128xf32>
    %cst_6 = arith.constant 2.000000e-01 : f32
    %8 = vector.broadcast %cst_6 : f32 to vector<512x128xf32>
    %9 = arith.mulf %8, %5 : vector<512x128xf32>
    %10 = arith.select %7, %5, %9 : vector<512x128xi1>, vector<512x128xf32>
    %c0_7 = arith.constant 0 : index
    %c0_8 = arith.constant 0 : index
    %11 = vector.load %arg4[%c0_7, %c0_8] : memref<512x128xf32, #tpu.memory_space<vmem>>, vector<512x128xf32>
    tpu.vector_store %arg4[%c0_7, %c0_8], %10 {strides = array<i32>} : memref<512x128xf32, #tpu.memory_space<vmem>>, vector<512x128xf32>,
    return
  }
  func.func @transform_0(%arg0: i32) -> (i32, i32) {
    %c0_i32 = arith.constant 0 : i32
    %c0_i32_0 = arith.constant 0 : i32
    return %arg0, %c0_i32 : i32, i32
  }
  func.func @transform_1(%arg0: i32) -> (i32, i32) {
    %c0_i32 = arith.constant 0 : i32
    %c0_i32_0 = arith.constant 0 : i32
    %c0_i32_1 = arith.constant 0 : i32
    return %c0_i32, %c0_i32_0 : i32, i32
  }
  func.func @transform_2(%arg0: i32) -> (i32, i32) {
    %c0_i32 = arith.constant 0 : i32
    %c0_i32_0 = arith.constant 0 : i32
    %c0_i32_1 = arith.constant 0 : i32
    return %c0_i32, %c0_i32_0 : i32, i32
  }
  func.func @transform_3(%arg0: i32) -> (i32, i32) {
    %c0_i32 = arith.constant 0 : i32
    %c0_i32_0 = arith.constant 0 : i32
    return %arg0, %c0_i32 : i32, i32
  }
}

</mosaic_0001>

<llo_original>
// kernel: tpu_custom_call.1
$region0: #{tpu_custom_call.1}
  #allocation0 [shape = 'u32[]', space=smem, size = 0x4, offset = 0x4, fixed_abs, tag = 'smem constant byte address 0x4 - core index']
  #allocation1 [shape = 'u32[144,128]{1,0:T(1,128)}', space=vmem, size = 0x12000, scoped, tag = 'internal scratch']
  %s0 = inlined_call_operand.vmem [shape: bf16[512,64], index: 0, kind: input, shape index: {}]
  %s1 = inlined_call_operand.vmem [shape: bf16[64,128], index: 1, kind: input, shape index: {}]
  %s2 = inlined_call_operand.vmem [shape: f32[1,128], index: 2, kind: input, shape index: {}]
  %s3 = inlined_call_operand.hbm [shape: f32[512,128], index: 3, kind: output, shape index: {}]
  %s4 = sld [smem:[#allocation0]]
  $region22: #{tpu_custom_call.1} parent=0
    _
  %s6 = ssub.s32 1, %s4
  %s7 = scalar_select 0, %s6, %s4
  $region1: #{tpu_custom_call.1} parent=0
    #allocation2 [shape = 'u8[262144]{0}', space=vmem, size = 0x40000, scoped, tag = 'output window, operand 0, single buffered']
    #allocation3 [shape = 's32[1]{0}', space=sflag, size = 0x4, scoped, tag = 'scoped memory for tpu_custom_call.1']
    %8 = vsyncpa [#allocation3], 0
    // Predicated region
    $region2: #{tpu_custom_call.1} parent=1 // pred_check
      _
    $region3: #{tpu_custom_call.1} parent=1 // pred_check_branch
      %10 = sbr.rel (0) target = $region5
    $region4: #{tpu_custom_call.1} parent=1 // pred_region
      _
    $region5: #{tpu_custom_call.1} parent=1 // pred_fallthru
      _
    // Predicated region
    $region6: #{tpu_custom_call.1} parent=1 // pred_check
      _
    $region7: #{tpu_custom_call.1} parent=1 // pred_check_branch
      %12 = sbr.rel (0) target = $region9
    $region8: #{tpu_custom_call.1} parent=1 // pred_region
      _
    $region9: #{tpu_custom_call.1} parent=1 // pred_fallthru
      _
    // Predicated region
    $region10: #{tpu_custom_call.1} parent=1 // pred_check
      _
    $region11: #{tpu_custom_call.1} parent=1 // pred_check_branch
      %14 = sbr.rel (0) target = $region13
    $region12: #{tpu_custom_call.1} parent=1 // pred_region
      _
    $region13: #{tpu_custom_call.1} parent=1 // pred_fallthru
      _
    %v16 = vld [vmem:[%s0] sm:$0xf]
    %v17 = vld [vmem:[%s0 + $0x4] sm:$0xf]
    %v18 = vld [vmem:[%s0 + $0x8] sm:$0xf]
    %v19 = vld [vmem:[%s0 + $0xc] sm:$0xf]
    %v20 = vld [vmem:[%s0 + $0x10] sm:$0xf]
    %v21 = vld [vmem:[%s0 + $0x14] sm:$0xf]
    %v22 = vld [vmem:[%s0 + $0x18] sm:$0xf]
    %v23 = vld [vmem:[%s0 + $0x1c] sm:$0xf]
    %v24 = vld [vmem:[%s0 + $0x20] sm:$0xf]
    %v25 = vld [vmem:[%s0 + $0x24] sm:$0xf]
    %v26 = vld [vmem:[%s0 + $0x28] sm:$0xf]
    %v27 = vld [vmem:[%s0 + $0x2c] sm:$0xf]
    %v28 = vld [vmem:[%s0 + $0x30] sm:$0xf]
    %v29 = vld [vmem:[%s0 + $0x34] sm:$0xf]
    %v30 = vld [vmem:[%s0 + $0x38] sm:$0xf]
    %v31 = vld [vmem:[%s0 + $0x3c] sm:$0xf]
    %v32 = vld [vmem:[%s0 + $0x40] sm:$0xf]
    %v33 = vld [vmem:[%s0 + $0x44] sm:$0xf]
    %v34 = vld [vmem:[%s0 + $0x48] sm:$0xf]
    %v35 = vld [vmem:[%s0 + $0x4c] sm:$0xf]
    %v36 = vld [vmem:[%s0 + $0x50] sm:$0xf]
    %v37 = vld [vmem:[%s0 + $0x54] sm:$0xf]
    %v38 = vld [vmem:[%s0 + $0x58] sm:$0xf]
    %v39 = vld [vmem:[%s0 + $0x5c] sm:$0xf]
    %v40 = vld [vmem:[%s0 + $0x60] sm:$0xf]
    %v41 = vld [vmem:[%s0 + $0x64] sm:$0xf]
    %v42 = vld [vmem:[%s0 + $0x68] sm:$0xf]
    %v43 = vld [vmem:[%s0 + $0x6c] sm:$0xf]
    %v44 = vld [vmem:[%s0 + $0x70] sm:$0xf]
    %v45 = vld [vmem:[%s0 + $0x74] sm:$0xf]
    %v46 = vld [vmem:[%s0 + $0x78] sm:$0xf]
    %v47 = vld [vmem:[%s0 + $0x7c] sm:$0xf]
    %v48 = vld [vmem:[%s0 + $0x80] sm:$0xf]
    %v49 = vld [vmem:[%s0 + $0x84] sm:$0xf]
    %v50 = vld [vmem:[%s0 + $0x88] sm:$0xf]
    %v51 = vld [vmem:[%s0 + $0x8c] sm:$0xf]
    %v52 = vld [vmem:[%s0 + $0x90] sm:$0xf]
    %v53 = vld [vmem:[%s0 + $0x94] sm:$0xf]
    %v54 = vld [vmem:[%s0 + $0x98] sm:$0xf]
    %v55 = vld [vmem:[%s0 + $0x9c] sm:$0xf]
    %v56 = vld [vmem:[%s0 + $0xa0] sm:$0xf]
    %v57 = vld [vmem:[%s0 + $0xa4] sm:$0xf]
    %v58 = vld [vmem:[%s0 + $0xa8] sm:$0xf]
    %v59 = vld [vmem:[%s0 + $0xac] sm:$0xf]
    %v60 = vld [vmem:[%s0 + $0xb0] sm:$0xf]
    %v61 = vld [vmem:[%s0 + $0xb4] sm:$0xf]
    %v62 = vld [vmem:[%s0 + $0xb8] sm:$0xf]
    %v63 = vld [vmem:[%s0 + $0xbc] sm:$0xf]
    %v64 = vld [vmem:[%s0 + $0xc0] sm:$0xf]
    %v65 = vld [vmem:[%s0 + $0xc4] sm:$0xf]
    %v66 = vld [vmem:[%s0 + $0xc8] sm:$0xf]
    %v67 = vld [vmem:[%s0 + $0xcc] sm:$0xf]
    %v68 = vld [vmem:[%s0 + $0xd0] sm:$0xf]
    %v69 = vld [vmem:[%s0 + $0xd4] sm:$0xf]
    %v70 = vld [vmem:[%s0 + $0xd8] sm:$0xf]
    %v71 = vld [vmem:[%s0 + $0xdc] sm:$0xf]
    %v72 = vld [vmem:[%s0 + $0xe0] sm:$0xf]
    %v73 = vld [vmem:[%s0 + $0xe4] sm:$0xf]
    %v74 = vld [vmem:[%s0 + $0xe8] sm:$0xf]
    %v75 = vld [vmem:[%s0 + $0xec] sm:$0xf]
    %v76 = vld [vmem:[%s0 + $0xf0] sm:$0xf]
    %v77 = vld [vmem:[%s0 + $0xf4] sm:$0xf]
    %v78 = vld [vmem:[%s0 + $0xf8] sm:$0xf]
    %v79 = vld [vmem:[%s0 + $0xfc] sm:$0xf]
    %v80 = vld [vmem:[%s1] sm:$0xf]
    %v81 = vld [vmem:[%s1 + $0x4] sm:$0xf]
    %v82 = vld [vmem:[%s1 + $0x8] sm:$0xf]
    %v83 = vld [vmem:[%s1 + $0xc] sm:$0xf]
    %v84 = vld [vmem:[%s1 + $0x10] sm:$0xf]
    %v85 = vld [vmem:[%s1 + $0x14] sm:$0xf]
    %v86 = vld [vmem:[%s1 + $0x18] sm:$0xf]
    %v87 = vld [vmem:[%s1 + $0x1c] sm:$0xf]
    %v88 = vld [vmem:[%s2] sm:$0x1]
    %v90 = vlaneseq
    %v91 = vshrl.u32 %v90, 7
    %v92 = vsub.s32 0, %v91
    %v93 = vrot.slane %v88, %v92
    %v159 = vunpack.c.l.b16 %v16
    %v160 = vunpack.c.l.b16 %v17
    %v161 = vunpack.c.l.b16 %v18
    %v162 = vunpack.c.l.b16 %v19
    %v163 = vunpack.c.l.b16 %v20
    %v164 = vunpack.c.l.b16 %v21
    %v165 = vunpack.c.l.b16 %v22
    %v166 = vunpack.c.l.b16 %v23
    %v167 = vunpack.c.l.b16 %v24
    %v168 = vunpack.c.l.b16 %v25
    %v169 = vunpack.c.l.b16 %v26
    %v170 = vunpack.c.l.b16 %v27
    %v171 = vunpack.c.l.b16 %v28
    %v172 = vunpack.c.l.b16 %v29
    %v173 = vunpack.c.l.b16 %v30
    %v174 = vunpack.c.l.b16 %v31
    %v175 = vunpack.c.l.b16 %v32
    %v176 = vunpack.c.l.b16 %v33
    %v177 = vunpack.c.l.b16 %v34
    %v178 = vunpack.c.l.b16 %v35
    %v179 = vunpack.c.l.b16 %v36
    %v180 = vunpack.c.l.b16 %v37
    %v181 = vunpack.c.l.b16 %v38
    %v182 = vunpack.c.l.b16 %v39
    %v183 = vunpack.c.l.b16 %v40
    %v184 = vunpack.c.l.b16 %v41
    %v185 = vunpack.c.l.b16 %v42
    %v186 = vunpack.c.l.b16 %v43
    %v187 = vunpack.c.l.b16 %v44
    %v188 = vunpack.c.l.b16 %v45
    %v189 = vunpack.c.l.b16 %v46
    %v190 = vunpack.c.l.b16 %v47
    %v191 = vunpack.c.l.b16 %v48
    %v192 = vunpack.c.l.b16 %v49
    %v193 = vunpack.c.l.b16 %v50
    %v194 = vunpack.c.l.b16 %v51
    %v195 = vunpack.c.l.b16 %v52
    %v196 = vunpack.c.l.b16 %v53
    %v197 = vunpack.c.l.b16 %v54
    %v198 = vunpack.c.l.b16 %v55
    %v199 = vunpack.c.l.b16 %v56
    %v200 = vunpack.c.l.b16 %v57
    %v201 = vunpack.c.l.b16 %v58
    %v202 = vunpack.c.l.b16 %v59
    %v203 = vunpack.c.l.b16 %v60
    %v204 = vunpack.c.l.b16 %v61
    %v205 = vunpack.c.l.b16 %v62
    %v206 = vunpack.c.l.b16 %v63
    %v207 = vunpack.c.l.b16 %v64
    %v208 = vunpack.c.l.b16 %v65
    %v209 = vunpack.c.l.b16 %v66
    %v210 = vunpack.c.l.b16 %v67
    %v211 = vunpack.c.l.b16 %v68
    %v212 = vunpack.c.l.b16 %v69
    %v213 = vunpack.c.l.b16 %v70
    %v214 = vunpack.c.l.b16 %v71
    %v215 = vunpack.c.l.b16 %v72
    %v216 = vunpack.c.l.b16 %v73
    %v217 = vunpack.c.l.b16 %v74
    %v218 = vunpack.c.l.b16 %v75
    %v219 = vunpack.c.l.b16 %v76
    %v220 = vunpack.c.l.b16 %v77
    %v221 = vunpack.c.l.b16 %v78
    %v222 = vunpack.c.l.b16 %v79
    %v223 = vpack.c.b16 %v160, %v159
    %v224 = vpack.c.b16 %v162, %v161
    %v225 = vpack.c.b16 %v164, %v163
    %v226 = vpack.c.b16 %v166, %v165
    %v227 = vpack.c.b16 %v168, %v167
    %v228 = vpack.c.b16 %v170, %v169
    %v229 = vpack.c.b16 %v172, %v171
    %v230 = vpack.c.b16 %v174, %v173
    %v231 = vpack.c.b16 %v176, %v175
    %v232 = vpack.c.b16 %v178, %v177
    %v233 = vpack.c.b16 %v180, %v179
    %v234 = vpack.c.b16 %v182, %v181
    %v235 = vpack.c.b16 %v184, %v183
    %v236 = vpack.c.b16 %v186, %v185
    %v237 = vpack.c.b16 %v188, %v187
    %v238 = vpack.c.b16 %v190, %v189
    %v239 = vpack.c.b16 %v192, %v191
    %v240 = vpack.c.b16 %v194, %v193
    %v241 = vpack.c.b16 %v196, %v195
    %v242 = vpack.c.b16 %v198, %v197
    %v243 = vpack.c.b16 %v200, %v199
    %v244 = vpack.c.b16 %v202, %v201
    %v245 = vpack.c.b16 %v204, %v203
    %v246 = vpack.c.b16 %v206, %v205
    %v247 = vpack.c.b16 %v208, %v207
    %v248 = vpack.c.b16 %v210, %v209
    %v249 = vpack.c.b16 %v212, %v211
    %v250 = vpack.c.b16 %v214, %v213
    %v251 = vpack.c.b16 %v216, %v215
    %v252 = vpack.c.b16 %v218, %v217
    %v253 = vpack.c.b16 %v220, %v219
    %v254 = vpack.c.b16 %v222, %v221
    %v263 = vunpack.c.l.b16 %v80
    %v264 = vunpack.c.l.b16 %v81
    %v265 = vunpack.c.l.b16 %v82
    %v266 = vunpack.c.l.b16 %v83
    %v267 = vunpack.c.l.b16 %v84
    %v268 = vunpack.c.l.b16 %v85
    %v269 = vunpack.c.l.b16 %v86
    %v270 = vunpack.c.l.b16 %v87
    %v271 = vpack.c.b16 %v264, %v263
    %v272 = vpack.c.b16 %v266, %v265
    %v273 = vpack.c.b16 %v268, %v267
    %v274 = vpack.c.b16 %v270, %v269
    %vm279 = vcmask 523264
    %v281 = vsel %vm279, %v223, 0
    %v284 = vsel %vm279, %v224, 0
    %v287 = vsel %vm279, %v225, 0
    %v290 = vsel %vm279, %v226, 0
    %v293 = vsel %vm279, %v227, 0
    %v296 = vsel %vm279, %v228, 0
    %v299 = vsel %vm279, %v229, 0
    %v302 = vsel %vm279, %v230, 0
    %v305 = vsel %vm279, %v231, 0
    %v308 = vsel %vm279, %v232, 0
    %v311 = vsel %vm279, %v233, 0
    %v314 = vsel %vm279, %v234, 0
    %v317 = vsel %vm279, %v235, 0
    %v320 = vsel %vm279, %v236, 0
    %v323 = vsel %vm279, %v237, 0
    %v326 = vsel %vm279, %v238, 0
    %v329 = vsel %vm279, %v239, 0
    %v332 = vsel %vm279, %v240, 0
    %v335 = vsel %vm279, %v241, 0
    %v338 = vsel %vm279, %v242, 0
    %v341 = vsel %vm279, %v243, 0
    %v344 = vsel %vm279, %v244, 0
    %v347 = vsel %vm279, %v245, 0
    %v350 = vsel %vm279, %v246, 0
    %v353 = vsel %vm279, %v247, 0
    %v356 = vsel %vm279, %v248, 0
    %v359 = vsel %vm279, %v249, 0
    %v362 = vsel %vm279, %v250, 0
    %v365 = vsel %vm279, %v251, 0
    %v368 = vsel %vm279, %v252, 0
    %v371 = vsel %vm279, %v253, 0
    %v374 = vsel %vm279, %v254, 0
    %376 = vmatprep.subr.bf16.mxu0 0
    %377 = vmatpush1.bf16.msra.mxu0 0
    %378 = vmatprep.subr.bf16.mxu0 0
    %379 = vmatpush1.bf16.msra.mxu0 0
    %380 = vmatprep.subr.bf16.mxu0 0
    %381 = vmatpush1.bf16.msra.mxu0 0
    %382 = vmatprep.subr.bf16.mxu0 0
    %383 = vmatpush1.bf16.msra.mxu0 0
    %384 = vmatprep.subr.bf16.mxu0 0
    %385 = vmatpush1.bf16.msra.mxu0 %v274
    %386 = vmatprep.subr.bf16.mxu0 0
    %387 = vmatpush1.bf16.msra.mxu0 %v273
    %388 = vmatprep.subr.bf16.mxu0 0
    %389 = vmatpush1.bf16.msra.mxu0 %v272
    %390 = vmatprep.subr.bf16.mxu0 0
    %391 = vmatpush1.bf16.msra.mxu0 %v271
    %392 = vmatprep.subr.bf16.mxu0 0
    %393 = vmatpush2.bf16.msra.mxu0 0
    %394 = vmatprep.subr.bf16.mxu0 0
    %395 = vmatpush2.bf16.msra.mxu0 0
    %396 = vmatprep.subr.bf16.mxu0 0
    %397 = vmatpush2.bf16.msra.mxu0 0
    %398 = vmatprep.subr.bf16.mxu0 0
    %399 = vmatpush2.bf16.msra.mxu0 0
    %400 = vmatprep.subr.bf16.mxu0 0
    %401 = vmatpush2.bf16.msra.mxu0 0
    %402 = vmatprep.subr.bf16.mxu0 0
    %403 = vmatpush2.bf16.msra.mxu0 0
    %404 = vmatprep.subr.bf16.mxu0 0
    %405 = vmatpush2.bf16.msra.mxu0 0
    %406 = vmatprep.subr.bf16.mxu0 0
    %407 = vmatpush2.bf16.msra.mxu0 0
    %408 = vmatprep.mubr.bf16.mxu0 0
    %409 = vmatmul.mubr.bf16.gmra.mxu0 %v281
    %v410 = vpop.f32.mrf.mxu0
    %v411 = vadd.f32 %v93, %v410
    %v412 = vpop.f32.mrf.mxu0
    %v413 = vpop.f32.mrf.mxu0
    %v414 = vadd.f32 %v93, %v413
    %v415 = vpop.f32.mrf.mxu0
    %416 = vmatprep.mubr.bf16.mxu0 0
    %417 = vmatmul.mubr.bf16.gmra.mxu0 %v284
    %v418 = vpop.f32.mrf.mxu0
    %v419 = vadd.f32 %v93, %v418
    %v420 = vpop.f32.mrf.mxu0
    %v421 = vpop.f32.mrf.mxu0
    %v422 = vadd.f32 %v93, %v421
    %v423 = vpop.f32.mrf.mxu0
    %424 = vmatprep.mubr.bf16.mxu0 0
    %425 = vmatmul.mubr.bf16.gmra.mxu0 %v287
    %v426 = vpop.f32.mrf.mxu0
    %v427 = vadd.f32 %v93, %v426
    %v428 = vpop.f32.mrf.mxu0
    %v429 = vpop.f32.mrf.mxu0
    %v430 = vadd.f32 %v93, %v429
    %v431 = vpop.f32.mrf.mxu0
    %432 = vmatprep.mubr.bf16.mxu0 0
    %433 = vmatmul.mubr.bf16.gmra.mxu0 %v290
    %v434 = vpop.f32.mrf.mxu0
    %v435 = vadd.f32 %v93, %v434
    %v436 = vpop.f32.mrf.mxu0
    %v437 = vpop.f32.mrf.mxu0
    %v438 = vadd.f32 %v93, %v437
    %v439 = vpop.f32.mrf.mxu0
    %440 = vmatprep.mubr.bf16.mxu0 0
    %441 = vmatmul.mubr.bf16.gmra.mxu0 %v293
    %v442 = vpop.f32.mrf.mxu0
    %v443 = vadd.f32 %v93, %v442
    %v444 = vpop.f32.mrf.mxu0
    %v445 = vpop.f32.mrf.mxu0
    %v446 = vadd.f32 %v93, %v445
    %v447 = vpop.f32.mrf.mxu0
    %448 = vmatprep.mubr.bf16.mxu0 0
    %449 = vmatmul.mubr.bf16.gmra.mxu0 %v296
    %v450 = vpop.f32.mrf.mxu0
    %v451 = vadd.f32 %v93, %v450
    %v452 = vpop.f32.mrf.mxu0
    %v453 = vpop.f32.mrf.mxu0
    %v454 = vadd.f32 %v93, %v453
    %v455 = vpop.f32.mrf.mxu0
    %456 = vmatprep.mubr.bf16.mxu0 0
    %457 = vmatmul.mubr.bf16.gmra.mxu0 %v299
    %v458 = vpop.f32.mrf.mxu0
    %v459 = vadd.f32 %v93, %v458
    %v460 = vpop.f32.mrf.mxu0
    %v461 = vpop.f32.mrf.mxu0
    %v462 = vadd.f32 %v93, %v461
    %v463 = vpop.f32.mrf.mxu0
    %464 = vmatprep.mubr.bf16.mxu0 0
    %465 = vmatmul.mubr.bf16.gmra.mxu0 %v302
    %v466 = vpop.f32.mrf.mxu0
    %v467 = vadd.f32 %v93, %v466
    %v468 = vpop.f32.mrf.mxu0
    %v469 = vpop.f32.mrf.mxu0
    %v470 = vadd.f32 %v93, %v469
    %v471 = vpop.f32.mrf.mxu0
    %472 = vmatprep.mubr.bf16.mxu0 0
    %473 = vmatmul.mubr.bf16.gmra.mxu0 %v305
    %v474 = vpop.f32.mrf.mxu0
    %v475 = vadd.f32 %v93, %v474
    %v476 = vpop.f32.mrf.mxu0
    %v477 = vpop.f32.mrf.mxu0
    %v478 = vadd.f32 %v93, %v477
    %v479 = vpop.f32.mrf.mxu0
    %480 = vmatprep.mubr.bf16.mxu0 0
    %481 = vmatmul.mubr.bf16.gmra.mxu0 %v308
    %v482 = vpop.f32.mrf.mxu0
    %v483 = vadd.f32 %v93, %v482
    %v484 = vpop.f32.mrf.mxu0
    %v485 = vpop.f32.mrf.mxu0
    %v486 = vadd.f32 %v93, %v485
    %v487 = vpop.f32.mrf.mxu0
    %488 = vmatprep.mubr.bf16.mxu0 0
    %489 = vmatmul.mubr.bf16.gmra.mxu0 %v311
    %v490 = vpop.f32.mrf.mxu0
    %v491 = vadd.f32 %v93, %v490
    %v492 = vpop.f32.mrf.mxu0
    %v493 = vpop.f32.mrf.mxu0
    %v494 = vadd.f32 %v93, %v493
    %v495 = vpop.f32.mrf.mxu0
    %496 = vmatprep.mubr.bf16.mxu0 0
    %497 = vmatmul.mubr.bf16.gmra.mxu0 %v314
    %v498 = vpop.f32.mrf.mxu0
    %v499 = vadd.f32 %v93, %v498
    %v500 = vpop.f32.mrf.mxu0
    %v501 = vpop.f32.mrf.mxu0
    %v502 = vadd.f32 %v93, %v501
    %v503 = vpop.f32.mrf.mxu0
    %504 = vmatprep.mubr.bf16.mxu0 0
    %505 = vmatmul.mubr.bf16.gmra.mxu0 %v317
    %v506 = vpop.f32.mrf.mxu0
    %v507 = vadd.f32 %v93, %v506
    %v508 = vpop.f32.mrf.mxu0
    %v509 = vpop.f32.mrf.mxu0
    %v510 = vadd.f32 %v93, %v509
    %v511 = vpop.f32.mrf.mxu0
    %512 = vmatprep.mubr.bf16.mxu0 0
    %513 = vmatmul.mubr.bf16.gmra.mxu0 %v320
    %v514 = vpop.f32.mrf.mxu0
    %v515 = vadd.f32 %v93, %v514
    %v516 = vpop.f32.mrf.mxu0
    %v517 = vpop.f32.mrf.mxu0
    %v518 = vadd.f32 %v93, %v517
    %v519 = vpop.f32.mrf.mxu0
    %520 = vmatprep.mubr.bf16.mxu0 0
    %521 = vmatmul.mubr.bf16.gmra.mxu0 %v323
    %v522 = vpop.f32.mrf.mxu0
    %v523 = vadd.f32 %v93, %v522
    %v524 = vpop.f32.mrf.mxu0
    %v525 = vpop.f32.mrf.mxu0
    %v526 = vadd.f32 %v93, %v525
    %v527 = vpop.f32.mrf.mxu0
    %528 = vmatprep.mubr.bf16.mxu0 0
    %529 = vmatmul.mubr.bf16.gmra.mxu0 %v326
    %v530 = vpop.f32.mrf.mxu0
    %v531 = vadd.f32 %v93, %v530
    %v532 = vpop.f32.mrf.mxu0
    %v533 = vpop.f32.mrf.mxu0
    %v534 = vadd.f32 %v93, %v533
    %v535 = vpop.f32.mrf.mxu0
    %536 = vmatprep.mubr.bf16.mxu0 0
    %537 = vmatmul.mubr.bf16.gmra.mxu0 %v329
    %v538 = vpop.f32.mrf.mxu0
    %v539 = vadd.f32 %v93, %v538
    %v540 = vpop.f32.mrf.mxu0
    %v541 = vpop.f32.mrf.mxu0
    %v542 = vadd.f32 %v93, %v541
    %v543 = vpop.f32.mrf.mxu0
    %544 = vmatprep.mubr.bf16.mxu0 0
    %545 = vmatmul.mubr.bf16.gmra.mxu0 %v332
    %v546 = vpop.f32.mrf.mxu0
    %v547 = vadd.f32 %v93, %v546
    %v548 = vpop.f32.mrf.mxu0
    %v549 = vpop.f32.mrf.mxu0
    %v550 = vadd.f32 %v93, %v549
    %v551 = vpop.f32.mrf.mxu0
    %552 = vmatprep.mubr.bf16.mxu0 0
    %553 = vmatmul.mubr.bf16.gmra.mxu0 %v335
    %v554 = vpop.f32.mrf.mxu0
    %v555 = vadd.f32 %v93, %v554
    %v556 = vpop.f32.mrf.mxu0
    %v557 = vpop.f32.mrf.mxu0
    %v558 = vadd.f32 %v93, %v557
    %v559 = vpop.f32.mrf.mxu0
    %560 = vmatprep.mubr.bf16.mxu0 0
    %561 = vmatmul.mubr.bf16.gmra.mxu0 %v338
    %v562 = vpop.f32.mrf.mxu0
    %v563 = vadd.f32 %v93, %v562
    %v564 = vpop.f32.mrf.mxu0
    %v565 = vpop.f32.mrf.mxu0
    %v566 = vadd.f32 %v93, %v565
    %v567 = vpop.f32.mrf.mxu0
    %568 = vmatprep.mubr.bf16.mxu0 0
    %569 = vmatmul.mubr.bf16.gmra.mxu0 %v341
    %v570 = vpop.f32.mrf.mxu0
    %v571 = vadd.f32 %v93, %v570
    %v572 = vpop.f32.mrf.mxu0
    %v573 = vpop.f32.mrf.mxu0
    %v574 = vadd.f32 %v93, %v573
    %v575 = vpop.f32.mrf.mxu0
    %576 = vmatprep.mubr.bf16.mxu0 0
    %577 = vmatmul.mubr.bf16.gmra.mxu0 %v344
    %v578 = vpop.f32.mrf.mxu0
    %v579 = vadd.f32 %v93, %v578
    %v580 = vpop.f32.mrf.mxu0
    %v581 = vpop.f32.mrf.mxu0
    %v582 = vadd.f32 %v93, %v581
    %v583 = vpop.f32.mrf.mxu0
    %584 = vmatprep.mubr.bf16.mxu0 0
    %585 = vmatmul.mubr.bf16.gmra.mxu0 %v347
    %v586 = vpop.f32.mrf.mxu0
    %v587 = vadd.f32 %v93, %v586
    %v588 = vpop.f32.mrf.mxu0
    %v589 = vpop.f32.mrf.mxu0
    %v590 = vadd.f32 %v93, %v589
    %v591 = vpop.f32.mrf.mxu0
    %592 = vmatprep.mubr.bf16.mxu0 0
    %593 = vmatmul.mubr.bf16.gmra.mxu0 %v350
    %v594 = vpop.f32.mrf.mxu0
    %v595 = vadd.f32 %v93, %v594
    %v596 = vpop.f32.mrf.mxu0
    %v597 = vpop.f32.mrf.mxu0
    %v598 = vadd.f32 %v93, %v597
    %v599 = vpop.f32.mrf.mxu0
    %600 = vmatprep.mubr.bf16.mxu0 0
    %601 = vmatmul.mubr.bf16.gmra.mxu0 %v353
    %v602 = vpop.f32.mrf.mxu0
    %v603 = vadd.f32 %v93, %v602
    %v604 = vpop.f32.mrf.mxu0
    %v605 = vpop.f32.mrf.mxu0
    %v606 = vadd.f32 %v93, %v605
    %v607 = vpop.f32.mrf.mxu0
    %608 = vmatprep.mubr.bf16.mxu0 0
    %609 = vmatmul.mubr.bf16.gmra.mxu0 %v356
    %v610 = vpop.f32.mrf.mxu0
    %v611 = vadd.f32 %v93, %v610
    %v612 = vpop.f32.mrf.mxu0
    %v613 = vpop.f32.mrf.mxu0
    %v614 = vadd.f32 %v93, %v613
    %v615 = vpop.f32.mrf.mxu0
    %616 = vmatprep.mubr.bf16.mxu0 0
    %617 = vmatmul.mubr.bf16.gmra.mxu0 %v359
    %v618 = vpop.f32.mrf.mxu0
    %v619 = vadd.f32 %v93, %v618
    %v620 = vpop.f32.mrf.mxu0
    %v621 = vpop.f32.mrf.mxu0
    %v622 = vadd.f32 %v93, %v621
    %v623 = vpop.f32.mrf.mxu0
    %624 = vmatprep.mubr.bf16.mxu0 0
    %625 = vmatmul.mubr.bf16.gmra.mxu0 %v362
    %v626 = vpop.f32.mrf.mxu0
    %v627 = vadd.f32 %v93, %v626
    %v628 = vpop.f32.mrf.mxu0
    %v629 = vpop.f32.mrf.mxu0
    %v630 = vadd.f32 %v93, %v629
    %v631 = vpop.f32.mrf.mxu0
    %632 = vmatprep.mubr.bf16.mxu0 0
    %633 = vmatmul.mubr.bf16.gmra.mxu0 %v365
    %v634 = vpop.f32.mrf.mxu0
    %v635 = vadd.f32 %v93, %v634
    %v636 = vpop.f32.mrf.mxu0
    %v637 = vpop.f32.mrf.mxu0
    %v638 = vadd.f32 %v93, %v637
    %v639 = vpop.f32.mrf.mxu0
    %640 = vmatprep.mubr.bf16.mxu0 0
    %641 = vmatmul.mubr.bf16.gmra.mxu0 %v368
    %v642 = vpop.f32.mrf.mxu0
    %v643 = vadd.f32 %v93, %v642
    %v644 = vpop.f32.mrf.mxu0
    %v645 = vpop.f32.mrf.mxu0
    %v646 = vadd.f32 %v93, %v645
    %v647 = vpop.f32.mrf.mxu0
    %648 = vmatprep.mubr.bf16.mxu0 0
    %649 = vmatmul.mubr.bf16.gmra.mxu0 %v371
    %v650 = vpop.f32.mrf.mxu0
    %v651 = vadd.f32 %v93, %v650
    %v652 = vpop.f32.mrf.mxu0
    %v653 = vpop.f32.mrf.mxu0
    %v654 = vadd.f32 %v93, %v653
    %v655 = vpop.f32.mrf.mxu0
    %656 = vmatprep.mubr.bf16.mxu0 0
    %657 = vmatmul.mubr.bf16.gmra.mxu0 %v374
    %v658 = vpop.f32.mrf.mxu0
    %v659 = vadd.f32 %v93, %v658
    %v660 = vpop.f32.mrf.mxu0
    %v661 = vpop.f32.mrf.mxu0
    %v662 = vadd.f32 %v93, %v661
    %v663 = vpop.f32.mrf.mxu0
    %664 = vdwg.mxu0
    %vm665 = vcmp.ge.f32.partialorder %v411, 0.0
    %vm666 = vcmp.ge.f32.partialorder %v414, 0.0
    %vm667 = vcmp.ge.f32.partialorder %v419, 0.0
    %vm668 = vcmp.ge.f32.partialorder %v422, 0.0
    %vm669 = vcmp.ge.f32.partialorder %v427, 0.0
    %vm670 = vcmp.ge.f32.partialorder %v430, 0.0
    %vm671 = vcmp.ge.f32.partialorder %v435, 0.0
    %vm672 = vcmp.ge.f32.partialorder %v438, 0.0
    %vm673 = vcmp.ge.f32.partialorder %v443, 0.0
    %vm674 = vcmp.ge.f32.partialorder %v446, 0.0
    %vm675 = vcmp.ge.f32.partialorder %v451, 0.0
    %vm676 = vcmp.ge.f32.partialorder %v454, 0.0
    %vm677 = vcmp.ge.f32.partialorder %v459, 0.0
    %vm678 = vcmp.ge.f32.partialorder %v462, 0.0
    %vm679 = vcmp.ge.f32.partialorder %v467, 0.0
    %vm680 = vcmp.ge.f32.partialorder %v470, 0.0
    %vm681 = vcmp.ge.f32.partialorder %v475, 0.0
    %vm682 = vcmp.ge.f32.partialorder %v478, 0.0
    %vm683 = vcmp.ge.f32.partialorder %v483, 0.0
    %vm684 = vcmp.ge.f32.partialorder %v486, 0.0
    %vm685 = vcmp.ge.f32.partialorder %v491, 0.0
    %vm686 = vcmp.ge.f32.partialorder %v494, 0.0
    %vm687 = vcmp.ge.f32.partialorder %v499, 0.0
    %vm688 = vcmp.ge.f32.partialorder %v502, 0.0
    %vm689 = vcmp.ge.f32.partialorder %v507, 0.0
    %vm690 = vcmp.ge.f32.partialorder %v510, 0.0
    %vm691 = vcmp.ge.f32.partialorder %v515, 0.0
    %vm692 = vcmp.ge.f32.partialorder %v518, 0.0
    %vm693 = vcmp.ge.f32.partialorder %v523, 0.0
    %vm694 = vcmp.ge.f32.partialorder %v526, 0.0
    %vm695 = vcmp.ge.f32.partialorder %v531, 0.0
    %vm696 = vcmp.ge.f32.partialorder %v534, 0.0
    %vm697 = vcmp.ge.f32.partialorder %v539, 0.0
    %vm698 = vcmp.ge.f32.partialorder %v542, 0.0
    %vm699 = vcmp.ge.f32.partialorder %v547, 0.0
    %vm700 = vcmp.ge.f32.partialorder %v550, 0.0
    %vm701 = vcmp.ge.f32.partialorder %v555, 0.0
    %vm702 = vcmp.ge.f32.partialorder %v558, 0.0
    %vm703 = vcmp.ge.f32.partialorder %v563, 0.0
    %vm704 = vcmp.ge.f32.partialorder %v566, 0.0
    %vm705 = vcmp.ge.f32.partialorder %v571, 0.0
    %vm706 = vcmp.ge.f32.partialorder %v574, 0.0
    %vm707 = vcmp.ge.f32.partialorder %v579, 0.0
    %vm708 = vcmp.ge.f32.partialorder %v582, 0.0
    %vm709 = vcmp.ge.f32.partialorder %v587, 0.0
    %vm710 = vcmp.ge.f32.partialorder %v590, 0.0
    %vm711 = vcmp.ge.f32.partialorder %v595, 0.0
    %vm712 = vcmp.ge.f32.partialorder %v598, 0.0
    %vm713 = vcmp.ge.f32.partialorder %v603, 0.0
    %vm714 = vcmp.ge.f32.partialorder %v606, 0.0
    %vm715 = vcmp.ge.f32.partialorder %v611, 0.0
    %vm716 = vcmp.ge.f32.partialorder %v614, 0.0
    %vm717 = vcmp.ge.f32.partialorder %v619, 0.0
    %vm718 = vcmp.ge.f32.partialorder %v622, 0.0
    %vm719 = vcmp.ge.f32.partialorder %v627, 0.0
    %vm720 = vcmp.ge.f32.partialorder %v630, 0.0
    %vm721 = vcmp.ge.f32.partialorder %v635, 0.0
    %vm722 = vcmp.ge.f32.partialorder %v638, 0.0
    %vm723 = vcmp.ge.f32.partialorder %v643, 0.0
    %vm724 = vcmp.ge.f32.partialorder %v646, 0.0
    %vm725 = vcmp.ge.f32.partialorder %v651, 0.0
    %vm726 = vcmp.ge.f32.partialorder %v654, 0.0
    %vm727 = vcmp.ge.f32.partialorder %v659, 0.0
    %vm728 = vcmp.ge.f32.partialorder %v662, 0.0
    %v729 = vmul.f32 %v411, 0.2
    %v730 = vmul.f32 %v414, 0.2
    %v731 = vmul.f32 %v419, 0.2
    %v732 = vmul.f32 %v422, 0.2
    %v733 = vmul.f32 %v427, 0.2
    %v734 = vmul.f32 %v430, 0.2
    %v735 = vmul.f32 %v435, 0.2
    %v736 = vmul.f32 %v438, 0.2
    %v737 = vmul.f32 %v443, 0.2
    %v738 = vmul.f32 %v446, 0.2
    %v739 = vmul.f32 %v451, 0.2
    %v740 = vmul.f32 %v454, 0.2
    %v741 = vmul.f32 %v459, 0.2
    %v742 = vmul.f32 %v462, 0.2
    %v743 = vmul.f32 %v467, 0.2
    %v744 = vmul.f32 %v470, 0.2
    %v745 = vmul.f32 %v475, 0.2
    %v746 = vmul.f32 %v478, 0.2
    %v747 = vmul.f32 %v483, 0.2
    %v748 = vmul.f32 %v486, 0.2
    %v749 = vmul.f32 %v491, 0.2
    %v750 = vmul.f32 %v494, 0.2
    %v751 = vmul.f32 %v499, 0.2
    %v752 = vmul.f32 %v502, 0.2
    %v753 = vmul.f32 %v507, 0.2
    %v754 = vmul.f32 %v510, 0.2
    %v755 = vmul.f32 %v515, 0.2
    %v756 = vmul.f32 %v518, 0.2
    %v757 = vmul.f32 %v523, 0.2
    %v758 = vmul.f32 %v526, 0.2
    %v759 = vmul.f32 %v531, 0.2
    %v760 = vmul.f32 %v534, 0.2
    %v761 = vmul.f32 %v539, 0.2
    %v762 = vmul.f32 %v542, 0.2
    %v763 = vmul.f32 %v547, 0.2
    %v764 = vmul.f32 %v550, 0.2
    %v765 = vmul.f32 %v555, 0.2
    %v766 = vmul.f32 %v558, 0.2
    %v767 = vmul.f32 %v563, 0.2
    %v768 = vmul.f32 %v566, 0.2
    %v769 = vmul.f32 %v571, 0.2
    %v770 = vmul.f32 %v574, 0.2
    %v771 = vmul.f32 %v579, 0.2
    %v772 = vmul.f32 %v582, 0.2
    %v773 = vmul.f32 %v587, 0.2
    %v774 = vmul.f32 %v590, 0.2
    %v775 = vmul.f32 %v595, 0.2
    %v776 = vmul.f32 %v598, 0.2
    %v777 = vmul.f32 %v603, 0.2
    %v778 = vmul.f32 %v606, 0.2
    %v779 = vmul.f32 %v611, 0.2
    %v780 = vmul.f32 %v614, 0.2
    %v781 = vmul.f32 %v619, 0.2
    %v782 = vmul.f32 %v622, 0.2
    %v783 = vmul.f32 %v627, 0.2
    %v784 = vmul.f32 %v630, 0.2
    %v785 = vmul.f32 %v635, 0.2
    %v786 = vmul.f32 %v638, 0.2
    %v787 = vmul.f32 %v643, 0.2
    %v788 = vmul.f32 %v646, 0.2
    %v789 = vmul.f32 %v651, 0.2
    %v790 = vmul.f32 %v654, 0.2
    %v791 = vmul.f32 %v659, 0.2
    %v792 = vmul.f32 %v662, 0.2
    %v793 = vsel %vm665, %v411, %v729
    %v794 = vsel %vm666, %v414, %v730
    %v795 = vsel %vm667, %v419, %v731
    %v796 = vsel %vm668, %v422, %v732
    %v797 = vsel %vm669, %v427, %v733
    %v798 = vsel %vm670, %v430, %v734
    %v799 = vsel %vm671, %v435, %v735
    %v800 = vsel %vm672, %v438, %v736
    %v801 = vsel %vm673, %v443, %v737
    %v802 = vsel %vm674, %v446, %v738
    %v803 = vsel %vm675, %v451, %v739
    %v804 = vsel %vm676, %v454, %v740
    %v805 = vsel %vm677, %v459, %v741
    %v806 = vsel %vm678, %v462, %v742
    %v807 = vsel %vm679, %v467, %v743
    %v808 = vsel %vm680, %v470, %v744
    %v809 = vsel %vm681, %v475, %v745
    %v810 = vsel %vm682, %v478, %v746
    %v811 = vsel %vm683, %v483, %v747
    %v812 = vsel %vm684, %v486, %v748
    %v813 = vsel %vm685, %v491, %v749
    %v814 = vsel %vm686, %v494, %v750
    %v815 = vsel %vm687, %v499, %v751
    %v816 = vsel %vm688, %v502, %v752
    %v817 = vsel %vm689, %v507, %v753
    %v818 = vsel %vm690, %v510, %v754
    %v819 = vsel %vm691, %v515, %v755
    %v820 = vsel %vm692, %v518, %v756
    %v821 = vsel %vm693, %v523, %v757
    %v822 = vsel %vm694, %v526, %v758
    %v823 = vsel %vm695, %v531, %v759
    %v824 = vsel %vm696, %v534, %v760
    %v825 = vsel %vm697, %v539, %v761
    %v826 = vsel %vm698, %v542, %v762
    %v827 = vsel %vm699, %v547, %v763
    %v828 = vsel %vm700, %v550, %v764
    %v829 = vsel %vm701, %v555, %v765
    %v830 = vsel %vm702, %v558, %v766
    %v831 = vsel %vm703, %v563, %v767
    %v832 = vsel %vm704, %v566, %v768
    %v833 = vsel %vm705, %v571, %v769
    %v834 = vsel %vm706, %v574, %v770
    %v835 = vsel %vm707, %v579, %v771
    %v836 = vsel %vm708, %v582, %v772
    %v837 = vsel %vm709, %v587, %v773
    %v838 = vsel %vm710, %v590, %v774
    %v839 = vsel %vm711, %v595, %v775
    %v840 = vsel %vm712, %v598, %v776
    %v841 = vsel %vm713, %v603, %v777
    %v842 = vsel %vm714, %v606, %v778
    %v843 = vsel %vm715, %v611, %v779
    %v844 = vsel %vm716, %v614, %v780
    %v845 = vsel %vm717, %v619, %v781
    %v846 = vsel %vm718, %v622, %v782
    %v847 = vsel %vm719, %v627, %v783
    %v848 = vsel %vm720, %v630, %v784
    %v849 = vsel %vm721, %v635, %v785
    %v850 = vsel %vm722, %v638, %v786
    %v851 = vsel %vm723, %v643, %v787
    %v852 = vsel %vm724, %v646, %v788
    %v853 = vsel %vm725, %v651, %v789
    %v854 = vsel %vm726, %v654, %v790
    %v855 = vsel %vm727, %v659, %v791
    %v856 = vsel %vm728, %v662, %v792
    %857 = vst [vmem:[#allocation2] sm:$0xff] %v793
    %858 = vst [vmem:[#allocation2 + $0x8] sm:$0xff] %v794
    %859 = vst [vmem:[#allocation2 + $0x10] sm:$0xff] %v795
    %860 = vst [vmem:[#allocation2 + $0x18] sm:$0xff] %v796
    %861 = vst [vmem:[#allocation2 + $0x20] sm:$0xff] %v797
    %862 = vst [vmem:[#allocation2 + $0x28] sm:$0xff] %v798
    %863 = vst [vmem:[#allocation2 + $0x30] sm:$0xff] %v799
    %864 = vst [vmem:[#allocation2 + $0x38] sm:$0xff] %v800
    %865 = vst [vmem:[#allocation2 + $0x40] sm:$0xff] %v801
    %866 = vst [vmem:[#allocation2 + $0x48] sm:$0xff] %v802
    %867 = vst [vmem:[#allocation2 + $0x50] sm:$0xff] %v803
    %868 = vst [vmem:[#allocation2 + $0x58] sm:$0xff] %v804
    %869 = vst [vmem:[#allocation2 + $0x60] sm:$0xff] %v805
    %870 = vst [vmem:[#allocation2 + $0x68] sm:$0xff] %v806
    %871 = vst [vmem:[#allocation2 + $0x70] sm:$0xff] %v807
    %872 = vst [vmem:[#allocation2 + $0x78] sm:$0xff] %v808
    %873 = vst [vmem:[#allocation2 + $0x80] sm:$0xff] %v809
    %874 = vst [vmem:[#allocation2 + $0x88] sm:$0xff] %v810
    %875 = vst [vmem:[#allocation2 + $0x90] sm:$0xff] %v811
    %876 = vst [vmem:[#allocation2 + $0x98] sm:$0xff] %v812
    %877 = vst [vmem:[#allocation2 + $0xa0] sm:$0xff] %v813
    %878 = vst [vmem:[#allocation2 + $0xa8] sm:$0xff] %v814
    %879 = vst [vmem:[#allocation2 + $0xb0] sm:$0xff] %v815
    %880 = vst [vmem:[#allocation2 + $0xb8] sm:$0xff] %v816
    %881 = vst [vmem:[#allocation2 + $0xc0] sm:$0xff] %v817
    %882 = vst [vmem:[#allocation2 + $0xc8] sm:$0xff] %v818
    %883 = vst [vmem:[#allocation2 + $0xd0] sm:$0xff] %v819
    %884 = vst [vmem:[#allocation2 + $0xd8] sm:$0xff] %v820
    %885 = vst [vmem:[#allocation2 + $0xe0] sm:$0xff] %v821
    %886 = vst [vmem:[#allocation2 + $0xe8] sm:$0xff] %v822
    %887 = vst [vmem:[#allocation2 + $0xf0] sm:$0xff] %v823
    %888 = vst [vmem:[#allocation2 + $0xf8] sm:$0xff] %v824
    %889 = vst [vmem:[#allocation2 + $0x100] sm:$0xff] %v825
    %890 = vst [vmem:[#allocation2 + $0x108] sm:$0xff] %v826
    %891 = vst [vmem:[#allocation2 + $0x110] sm:$0xff] %v827
    %892 = vst [vmem:[#allocation2 + $0x118] sm:$0xff] %v828
    %893 = vst [vmem:[#allocation2 + $0x120] sm:$0xff] %v829
    %894 = vst [vmem:[#allocation2 + $0x128] sm:$0xff] %v830
    %895 = vst [vmem:[#allocation2 + $0x130] sm:$0xff] %v831
    %896 = vst [vmem:[#allocation2 + $0x138] sm:$0xff] %v832
    %897 = vst [vmem:[#allocation2 + $0x140] sm:$0xff] %v833
    %898 = vst [vmem:[#allocation2 + $0x148] sm:$0xff] %v834
    %899 = vst [vmem:[#allocation2 + $0x150] sm:$0xff] %v835
    %900 = vst [vmem:[#allocation2 + $0x158] sm:$0xff] %v836
    %901 = vst [vmem:[#allocation2 + $0x160] sm:$0xff] %v837
    %902 = vst [vmem:[#allocation2 + $0x168] sm:$0xff] %v838
    %903 = vst [vmem:[#allocation2 + $0x170] sm:$0xff] %v839
    %904 = vst [vmem:[#allocation2 + $0x178] sm:$0xff] %v840
    %905 = vst [vmem:[#allocation2 + $0x180] sm:$0xff] %v841
    %906 = vst [vmem:[#allocation2 + $0x188] sm:$0xff] %v842
    %907 = vst [vmem:[#allocation2 + $0x190] sm:$0xff] %v843
    %908 = vst [vmem:[#allocation2 + $0x198] sm:$0xff] %v844
    %909 = vst [vmem:[#allocation2 + $0x1a0] sm:$0xff] %v845
    %910 = vst [vmem:[#allocation2 + $0x1a8] sm:$0xff] %v846
    %911 = vst [vmem:[#allocation2 + $0x1b0] sm:$0xff] %v847
    %912 = vst [vmem:[#allocation2 + $0x1b8] sm:$0xff] %v848
    %913 = vst [vmem:[#allocation2 + $0x1c0] sm:$0xff] %v849
    %914 = vst [vmem:[#allocation2 + $0x1c8] sm:$0xff] %v850
    %915 = vst [vmem:[#allocation2 + $0x1d0] sm:$0xff] %v851
    %916 = vst [vmem:[#allocation2 + $0x1d8] sm:$0xff] %v852
    %917 = vst [vmem:[#allocation2 + $0x1e0] sm:$0xff] %v853
    %918 = vst [vmem:[#allocation2 + $0x1e8] sm:$0xff] %v854
    %919 = vst [vmem:[#allocation2 + $0x1f0] sm:$0xff] %v855
    %920 = vst [vmem:[#allocation2 + $0x1f8] sm:$0xff] %v856
    // Predicated region
    $region14: #{tpu_custom_call.1} parent=1 // pred_check
      _
    $region15: #{tpu_custom_call.1} parent=1 // pred_check_branch
      %922 = sbr.rel (0) target = $region17
    $region16: #{tpu_custom_call.1} parent=1 // pred_region
      %s924 = ssub.s32 8192, 8192
      %925 = vsyncadd [#allocation3], %s924
      %s926 = sshll.u32 [#allocation2], 4
      %s927 = int_to_ptr.vmem [resolvable:$true] %s926
      %932 = dma.vmem_to_hbm [thread:$0]  %s927, 8192, %s3, [#allocation3], 128, 128, 8
    $region17: #{tpu_custom_call.1} parent=1 // pred_fallthru
      _
    // Predicated region
    $region18: #{tpu_custom_call.1} parent=1 // pred_check
      _
    $region19: #{tpu_custom_call.1} parent=1 // pred_check_branch
      %934 = sbr.rel (0) target = $region21
    $region20: #{tpu_custom_call.1} parent=1 // pred_region
      %935 = dma.done [#allocation3], 8192
    $region21: #{tpu_custom_call.1} parent=1 // pred_fallthru
      _
    %936 = vsyncpa [#allocation3], 1

</llo_original>
